<compile_context>
chip_gen: v7x
topology: tpu7x:2x2x1
jax: 0.10.0
libtpu: 0.0.40
codegen_flags: <defaults>
</compile_context>

<pallas_src>
import jax
import jax.numpy as jnp
from jax import lax
from jax.experimental import pallas as pl
from jax.experimental.pallas import tpu as pltpu

EPS = 1e-9  # matches nn.LayerNorm(eps=1e-09) in the module spec


# ----------------------------- kernels --------------------------------------
def _finish_layernorm(x, y_f32, gamma_f32, beta_f32, o_ref):
    """residual add + LayerNorm over the last dim, stats in f32."""
    s = x.astype(jnp.float32) + y_f32                 # (TR, H)
    mean = jnp.mean(s, axis=-1, keepdims=True)
    c = s - mean
    var = jnp.mean(c * c, axis=-1, keepdims=True)     # biased variance (LayerNorm)
    inv = lax.rsqrt(var + EPS)
    o_ref[...] = (c * inv * gamma_f32 + beta_f32).astype(o_ref.dtype)


def _fused_res_ln_kernel(x_ref, w_ref, blin_ref, g_ref, b_ref, o_ref):
    """No-dropout path: sublayer linear + residual + LayerNorm."""
    x = x_ref[...]                                    # (TR, H)
    y = jnp.dot(x, w_ref[...], preferred_element_type=jnp.float32)
    y = y + blin_ref[...].astype(jnp.float32)
    _finish_layernorm(x, y,
                      g_ref[...].astype(jnp.float32),
                      b_ref[...].astype(jnp.float32), o_ref)


def _fused_res_ln_dropout_kernel(x_ref, mask_ref, w_ref, blin_ref, g_ref, b_ref, o_ref):
    """Training path: sublayer linear + (pre-scaled) dropout mask + residual + LN."""
    x = x_ref[...]                                    # (TR, H)
    y = jnp.dot(x, w_ref[...], preferred_element_type=jnp.float32)
    y = (y + blin_ref[...].astype(jnp.float32)) * mask_ref[...].astype(jnp.float32)
    _finish_layernorm(x, y,
                      g_ref[...].astype(jnp.float32),
                      b_ref[...].astype(jnp.float32), o_ref)


# ----------------------------- wrapper ---------------------------------------
def residual_connection(x, W, b_lin, gamma, beta, *, dropout_p: float = 0.0,
                        rng_key=None, training: bool = True, row_tile: int = 256):
    """LayerNorm(x + dropout(x @ W + b_lin)) over the last dim, eps=1e-9.

    x: (B, S, H); W: (H, H); b_lin/gamma/beta: (H,).
    """
    B, S, H = x.shape
    rows = B * S
    dtype = x.dtype
    itemsize = jnp.dtype(dtype).itemsize

    use_dropout = training and dropout_p > 0.0

    # ---- pick row tile under a conservative per-generation VMEM budget ------
    # streamed (double-buffered) tiles: x, out (+ mask when dropout is on);
    # resident blocks: W (H x H) and b_lin / gamma / beta.
    n_stream = 3 if use_dropout else 2
    resident = H * H * itemsize + 3 * H * itemsize
    budget = 32 * 1024 * 1024            # safe scoped-VMEM target (v7x default)
    per_row = n_stream * 2 * H * itemsize
    cap = max(8, (budget - resident) // max(per_row, 1))
    rows_r8 = -(-rows // 8) * 8
    tile = max(8, (min(row_tile, cap) // 8) * 8)
    tile = min(tile, rows_r8)
    rows_p = -(-rows // tile) * tile     # pad rows up to a tile multiple

    x2 = x.reshape(rows, H)
    if rows_p != rows:
        x2 = jnp.pad(x2, ((0, rows_p - rows), (0, 0)))
    g2 = gamma.reshape(1, H).astype(dtype)
    b2 = beta.reshape(1, H).astype(dtype)
    bl2 = b_lin.reshape(1, H).astype(dtype)
    Wc = W.astype(dtype)

    grid = (rows_p // tile,)
    row_spec = pl.BlockSpec((tile, H), lambda i: (i, 0))
    const_spec = pl.BlockSpec((1, H), lambda i: (0, 0))
    w_spec = pl.BlockSpec((H, H), lambda i: (0, 0))     # resident across the grid

    vmem_needed = 2 * resident + per_row * tile + (4 << 20)
    compiler_params = pltpu.CompilerParams(
        dimension_semantics=("parallel",),             # grid steps are independent
        vmem_limit_bytes=int(min(max(vmem_needed, 16 * 1024 * 1024),
                                 64 * 1024 * 1024)),
    )
    out_shape = jax.ShapeDtypeStruct((rows_p, H), dtype)

    if use_dropout:
        if rng_key is None:
            rng_key = jax.random.PRNGKey(0)
        if dropout_p >= 1.0:
            # torch.nn.Dropout(p=1.0) zeroes everything; avoid 1/(1-p) overflow.
            mask = jnp.zeros((rows_p, H), dtype)
        else:
            keep = jax.random.bernoulli(rng_key, 1.0 - dropout_p, (rows_p, H))
            mask = keep.astype(dtype) * jnp.asarray(1.0 / (1.0 - dropout_p), dtype)
        out = pl.pallas_call(
            _fused_res_ln_dropout_kernel,
            out_shape=out_shape,
            grid_spec=pltpu.PrefetchScalarGridSpec(
                num_scalar_prefetch=0,
                grid=grid,
                in_specs=[row_spec, row_spec, w_spec, const_spec, const_spec,
                          const_spec],
                out_specs=row_spec,
            ),
            input_output_aliases={0: 0},               # reuse x's HBM buffer
            compiler_params=compiler_params,
        )(x2, mask, Wc, bl2, g2, b2)
    else:
        out = pl.pallas_call(
            _fused_res_ln_kernel,
            out_shape=out_shape,
            grid_spec=pltpu.PrefetchScalarGridSpec(
                num_scalar_prefetch=0,
                grid=grid,
                in_specs=[row_spec, w_spec, const_spec, const_spec, const_spec],
                out_specs=row_spec,
            ),
            input_output_aliases={0: 0},               # reuse x's HBM buffer
            compiler_params=compiler_params,
        )(x2, Wc, bl2, g2, b2)

    if rows_p != rows:
        out = out[:rows]
    return out.reshape(B, S, H)


# ----------------------------- reference -------------------------------------
def _reference(x, W, b_lin, gamma, beta):
    y = x @ W + b_lin
    s = x + y
    mu = jnp.mean(s, axis=-1, keepdims=True)
    var = jnp.mean((s - mu) ** 2, axis=-1, keepdims=True)
    return (s - mu) * lax.rsqrt(var + EPS) * gamma + beta


if __name__ == "__main__":
    B, S, H = 2, 8, 32
    key = jax.random.PRNGKey(0)
    kx, kw, kb, kd = jax.random.split(key, 4)

    x = jax.random.normal(kx, (B, S, H), dtype=jnp.float32)
    gamma = jnp.ones((H,), dtype=jnp.float32)     # PyTorch LayerNorm defaults
    beta = jnp.zeros((H,), dtype=jnp.float32)
    W = jax.random.normal(kw, (H, H), dtype=jnp.float32) * 0.05
    b_lin = jax.random.normal(kb, (H,), dtype=jnp.float32) * 0.05

    # --- eval mode / p=0: deterministic path, compare with pure-JAX reference ---
    out0 = residual_connection(x, W, b_lin, gamma, beta,
                               dropout_p=0.0, training=False)
    jax.block_until_ready(out0)
    ref0 = _reference(x, W, b_lin, gamma, beta)
    assert jnp.allclose(out0, ref0, atol=1e-5, rtol=1e-5), "mismatch vs reference"

    # --- ragged rows (exercises row padding), dropout inactive in eval mode ---
    xr = x[:, :5, :]
    outr = residual_connection(xr, W, b_lin, gamma, beta,
                               dropout_p=0.1, training=False)
    jax.block_until_ready(outr)
    refr = _reference(xr, W, b_lin, gamma, beta)
    assert jnp.allclose(outr, refr, atol=1e-5, rtol=1e-5), "padding path mismatch"

    # --- training mode with dropout active ---
    outd = residual_connection(x, W, b_lin, gamma, beta,
                               dropout_p=0.1, training=True, rng_key=kd)
    jax.block_until_ready(outd)
    assert outd.shape == (B, S, H)
    assert bool(jnp.all(jnp.isfinite(outd)))

    print("KERNEL_OK")
</pallas_src>

<mosaic_0001>
module attributes {stable_mosaic.version = 11 : i64} {
  func.func @_fused_res_ln_kernel(%arg0: i32, %arg1: memref<16x32xf32, #tpu.memory_space<vmem>>, %arg2: memref<32x32xf32, #tpu.memory_space<vmem>>, %arg3: memref<1x32xf32, #tpu.memory_space<vmem>>, %arg4: memref<1x32xf32, #tpu.memory_space<vmem>>, %arg5: memref<1x32xf32, #tpu.memory_space<vmem>>, %arg6: memref<16x32xf32, #tpu.memory_space<vmem>>) attributes {dimension_semantics = [#tpu.dimension_semantics<parallel>], iteration_bounds = array<i64: 1>, scalar_prefetch = 0 : i64, scratch_operands = 0 : i64, tpu.core_type = #tpu.core_type<tc>, window_params = [{transform_indices = @transform_0, window_bounds = array<i64: 16, 32>}, {pipeline_mode = #tpu.pipeline_mode<synchronous>, transform_indices = @transform_1, window_bounds = array<i64: 32, 32>}, {pipeline_mode = #tpu.pipeline_mode<synchronous>, transform_indices = @transform_2, window_bounds = array<i64: 1, 32>}, {pipeline_mode = #tpu.pipeline_mode<synchronous>, transform_indices = @transform_3, window_bounds = array<i64: 1, 32>}, {pipeline_mode = #tpu.pipeline_mode<synchronous>, transform_indices = @transform_4, window_bounds = array<i64: 1, 32>}, {transform_indices = @transform_5, window_bounds = array<i64: 16, 32>}]} {
    %c0 = arith.constant 0 : index
    %c0_0 = arith.constant 0 : index
    %0 = vector.load %arg1[%c0, %c0_0] : memref<16x32xf32, #tpu.memory_space<vmem>>, vector<16x32xf32>
    %c0_1 = arith.constant 0 : index
    %c0_2 = arith.constant 0 : index
    %1 = vector.load %arg2[%c0_1, %c0_2] : memref<32x32xf32, #tpu.memory_space<vmem>>, vector<32x32xf32>
    %cst = arith.constant dense<0.000000e+00> : vector<16x32xf32>
    %2 = tpu.matmul %0, %1, %cst {dimension_numbers = #tpu.dot_dimension_numbers<[1], [0], [0], [1], [0, 0, 1, 1], [], []>} : vector<16x32xf32>, vector<32x32xf32>, vector<16x32xf32> -> vector<16x32xf32>
    %c0_3 = arith.constant 0 : index
    %c0_4 = arith.constant 0 : index
    %3 = vector.load %arg3[%c0_3, %c0_4] : memref<1x32xf32, #tpu.memory_space<vmem>>, vector<1x32xf32>
    %4 = vector.broadcast %3 : vector<1x32xf32> to vector<16x32xf32>
    %5 = arith.addf %2, %4 : vector<16x32xf32>
    %c0_5 = arith.constant 0 : index
    %c0_6 = arith.constant 0 : index
    %6 = vector.load %arg4[%c0_5, %c0_6] : memref<1x32xf32, #tpu.memory_space<vmem>>, vector<1x32xf32>
    %c0_7 = arith.constant 0 : index
    %c0_8 = arith.constant 0 : index
    %7 = vector.load %arg5[%c0_7, %c0_8] : memref<1x32xf32, #tpu.memory_space<vmem>>, vector<1x32xf32>
    %8 = arith.addf %0, %5 : vector<16x32xf32>
    %cst_9 = arith.constant dense<0.000000e+00> : vector<16xf32>
    %9 = vector.multi_reduction <add>, %8, %cst_9 [1] : vector<16x32xf32> to vector<16xf32>
    %10 = vector.shape_cast %9 : vector<16xf32> to vector<16x1xf32>
    %cst_10 = arith.constant 3.200000e+01 : f32
    %11 = vector.broadcast %cst_10 : f32 to vector<16x1xf32>
    %12 = arith.divf %10, %11 : vector<16x1xf32>
    %13 = vector.broadcast %12 : vector<16x1xf32> to vector<16x32xf32>
    %14 = arith.subf %8, %13 : vector<16x32xf32>
    %15 = arith.mulf %14, %14 : vector<16x32xf32>
    %cst_11 = arith.constant dense<0.000000e+00> : vector<16xf32>
    %16 = vector.multi_reduction <add>, %15, %cst_11 [1] : vector<16x32xf32> to vector<16xf32>
    %17 = vector.shape_cast %16 : vector<16xf32> to vector<16x1xf32>
    %cst_12 = arith.constant 3.200000e+01 : f32
    %18 = vector.broadcast %cst_12 : f32 to vector<16x1xf32>
    %19 = arith.divf %17, %18 : vector<16x1xf32>
    %cst_13 = arith.constant 9.99999971E-10 : f32
    %20 = vector.broadcast %cst_13 : f32 to vector<16x1xf32>
    %21 = arith.addf %19, %20 : vector<16x1xf32>
    %22 = math.rsqrt %21 : vector<16x1xf32>
    %23 = vector.broadcast %22 : vector<16x1xf32> to vector<16x32xf32>
    %24 = arith.mulf %14, %23 : vector<16x32xf32>
    %25 = vector.broadcast %6 : vector<1x32xf32> to vector<16x32xf32>
    %26 = arith.mulf %24, %25 : vector<16x32xf32>
    %27 = vector.broadcast %7 : vector<1x32xf32> to vector<16x32xf32>
    %28 = arith.addf %26, %27 : vector<16x32xf32>
    %c0_14 = arith.constant 0 : index
    %c0_15 = arith.constant 0 : index
    %29 = vector.load %arg6[%c0_14, %c0_15] : memref<16x32xf32, #tpu.memory_space<vmem>>, vector<16x32xf32>
    tpu.vector_store %arg6[%c0_14, %c0_15], %28 {strides = array<i32>} : memref<16x32xf32, #tpu.memory_space<vmem>>, vector<16x32xf32>,
    return
  }
  func.func @transform_0(%arg0: i32) -> (i32, i32) {
    %c0_i32 = arith.constant 0 : i32
    %c0_i32_0 = arith.constant 0 : i32
    return %arg0, %c0_i32 : i32, i32
  }
  func.func @transform_1(%arg0: i32) -> (i32, i32) {
    %c0_i32 = arith.constant 0 : i32
    %c0_i32_0 = arith.constant 0 : i32
    %c0_i32_1 = arith.constant 0 : i32
    return %c0_i32, %c0_i32_0 : i32, i32
  }
  func.func @transform_2(%arg0: i32) -> (i32, i32) {
    %c0_i32 = arith.constant 0 : i32
    %c0_i32_0 = arith.constant 0 : i32
    %c0_i32_1 = arith.constant 0 : i32
    return %c0_i32, %c0_i32_0 : i32, i32
  }
  func.func @transform_3(%arg0: i32) -> (i32, i32) {
    %c0_i32 = arith.constant 0 : i32
    %c0_i32_0 = arith.constant 0 : i32
    %c0_i32_1 = arith.constant 0 : i32
    return %c0_i32, %c0_i32_0 : i32, i32
  }
  func.func @transform_4(%arg0: i32) -> (i32, i32) {
    %c0_i32 = arith.constant 0 : i32
    %c0_i32_0 = arith.constant 0 : i32
    %c0_i32_1 = arith.constant 0 : i32
    return %c0_i32, %c0_i32_0 : i32, i32
  }
  func.func @transform_5(%arg0: i32) -> (i32, i32) {
    %c0_i32 = arith.constant 0 : i32
    %c0_i32_0 = arith.constant 0 : i32
    return %arg0, %c0_i32 : i32, i32
  }
}

</mosaic_0001>

<llo_original>
// kernel: tpu_custom_call.1
$region0: #{tpu_custom_call.1}
  #allocation0 [shape = 'u32[]', space=smem, size = 0x4, offset = 0x4, fixed_abs, tag = 'smem constant byte address 0x4 - core index']
  #allocation1 [shape = 'u32[144,128]{1,0:T(1,128)}', space=vmem, size = 0x12000, scoped, tag = 'internal scratch']
  %s0 = inlined_call_operand.hbm [shape: f32[16,32], index: 0, kind: input, shape index: {}, may-alias: {0,5}]
  %s1 = inlined_call_operand.vmem [shape: f32[32,32], index: 1, kind: input, shape index: {}]
  %s2 = inlined_call_operand.vmem [shape: f32[1,32], index: 2, kind: input, shape index: {}]
  %s3 = inlined_call_operand.vmem [shape: f32[1,32], index: 3, kind: input, shape index: {}]
  %s4 = inlined_call_operand.vmem [shape: f32[1,32], index: 4, kind: input, shape index: {}]
  %s5 = inlined_call_operand.hbm [shape: f32[16,32], index: 5, kind: output, shape index: {}, may-alias: {0,5}]
  %s6 = sld [smem:[#allocation0]]
  $region34: #{tpu_custom_call.1} parent=0
    _
  %s8 = ssub.s32 1, %s6
  %s9 = scalar_select 0, %s8, %s6
  $region1: #{tpu_custom_call.1} parent=0
    #allocation2 [shape = 'u8[8192]{0}', space=vmem, size = 0x2000, scoped, tag = 'input window, operand 0, single buffered']
    #allocation3 [shape = 's32[1]{0}', space=sflag, size = 0x4, scoped, tag = 'scoped memory for tpu_custom_call.1']
    #allocation4 [shape = 's32[1]{0}', space=sflag, size = 0x4, scoped, tag = 'scoped memory for tpu_custom_call.1']
    #allocation5 [shape = 'u8[8192]{0}', space=vmem, size = 0x2000, scoped, tag = 'output window, operand 0, single buffered']
    %10 = vsyncpa [#allocation3], 0
    %11 = vsyncpa [#allocation4], 0
    // Predicated region
    $region2: #{tpu_custom_call.1} parent=1 // pred_check
      _
    $region3: #{tpu_custom_call.1} parent=1 // pred_check_branch
      %13 = sbr.rel (0) target = $region5
    $region4: #{tpu_custom_call.1} parent=1 // pred_region
      %s15 = ssub.s32 256, 256
      %16 = vsyncadd [#allocation3], %s15
      %s17 = sshll.u32 [#allocation2], 4
      %s18 = int_to_ptr.vmem [resolvable:$true] %s17
      %23 = dma.hbm_to_vmem [thread:$0]  %s0, 256, %s18, [#allocation3], 128, 128, 8
    $region5: #{tpu_custom_call.1} parent=1 // pred_fallthru
      _
    // Predicated region
    $region6: #{tpu_custom_call.1} parent=1 // pred_check
      _
    $region7: #{tpu_custom_call.1} parent=1 // pred_check_branch
      %25 = sbr.rel (0) target = $region9
    $region8: #{tpu_custom_call.1} parent=1 // pred_region
      _
    $region9: #{tpu_custom_call.1} parent=1 // pred_fallthru
      _
    // Predicated region
    $region10: #{tpu_custom_call.1} parent=1 // pred_check
      _
    $region11: #{tpu_custom_call.1} parent=1 // pred_check_branch
      %27 = sbr.rel (0) target = $region13
    $region12: #{tpu_custom_call.1} parent=1 // pred_region
      _
    $region13: #{tpu_custom_call.1} parent=1 // pred_fallthru
      _
    // Predicated region
    $region14: #{tpu_custom_call.1} parent=1 // pred_check
      _
    $region15: #{tpu_custom_call.1} parent=1 // pred_check_branch
      %29 = sbr.rel (0) target = $region17
    $region16: #{tpu_custom_call.1} parent=1 // pred_region
      _
    $region17: #{tpu_custom_call.1} parent=1 // pred_fallthru
      _
    // Predicated region
    $region18: #{tpu_custom_call.1} parent=1 // pred_check
      _
    $region19: #{tpu_custom_call.1} parent=1 // pred_check_branch
      %31 = sbr.rel (0) target = $region21
    $region20: #{tpu_custom_call.1} parent=1 // pred_region
      _
    $region21: #{tpu_custom_call.1} parent=1 // pred_fallthru
      _
    // Predicated region
    $region22: #{tpu_custom_call.1} parent=1 // pred_check
      _
    $region23: #{tpu_custom_call.1} parent=1 // pred_check_branch
      %33 = sbr.rel (0) target = $region25
    $region24: #{tpu_custom_call.1} parent=1 // pred_region
      %34 = dma.done [#allocation3], 256
    $region25: #{tpu_custom_call.1} parent=1 // pred_fallthru
      _
    %v35 = vld [vmem:[#allocation2] sm:$0xff]
    %v36 = vld [vmem:[#allocation2 + $0x8] sm:$0xff]
    %v37 = vld [vmem:[%s1] sm:$0xff]
    %v38 = vld [vmem:[%s1 + $0x8] sm:$0xff]
    %v39 = vld [vmem:[%s1 + $0x10] sm:$0xff]
    %v40 = vld [vmem:[%s1 + $0x18] sm:$0xff]
    %v41 = vld [vmem:[%s2] sm:$0x1]
    %v43 = vlaneseq
    %v44 = vshrl.u32 %v43, 7
    %v45 = vsub.s32 0, %v44
    %v46 = vrot.slane %v41, %v45
    %vm48 = vcmask 261120
    %v50 = vsel %vm48, %v35, 0
    %v53 = vsel %vm48, %v36, 0
    %55 = vmatprep.subr.mxu0 0.0
    %56 = vmatpush1.msra.mxu0 %v37
    %57 = vmatprep.subr.mxu0 0.0
    %58 = vmatpush1.msra.mxu0 %v38
    %59 = vmatprep.subr.mxu0 0.0
    %60 = vmatpush1.msra.mxu0 %v39
    %61 = vmatprep.subr.mxu0 0.0
    %62 = vmatpush1.msra.mxu0 %v40
    %63 = vmatprep.subr.mxu0 0.0
    %64 = vmatpush1.msra.mxu0 0.0
    %65 = vmatprep.subr.mxu0 0.0
    %66 = vmatpush1.msra.mxu0 0.0
    %67 = vmatprep.subr.mxu0 0.0
    %68 = vmatpush1.msra.mxu0 0.0
    %69 = vmatprep.subr.mxu0 0.0
    %70 = vmatpush1.msra.mxu0 0.0
    %71 = vmatprep.subr.mxu0 0.0
    %72 = vmatpush1.msra.mxu0 0.0
    %73 = vmatprep.subr.mxu0 0.0
    %74 = vmatpush1.msra.mxu0 0.0
    %75 = vmatprep.subr.mxu0 0.0
    %76 = vmatpush1.msra.mxu0 0.0
    %77 = vmatprep.subr.mxu0 0.0
    %78 = vmatpush1.msra.mxu0 0.0
    %79 = vmatprep.subr.mxu0 0.0
    %80 = vmatpush1.msra.mxu0 0.0
    %81 = vmatprep.subr.mxu0 0.0
    %82 = vmatpush1.msra.mxu0 0.0
    %83 = vmatprep.subr.mxu0 0.0
    %84 = vmatpush1.msra.mxu0 0.0
    %85 = vmatprep.subr.mxu0 0.0
    %86 = vmatpush1.msra.mxu0 0.0
    %87 = vmatprep.subr.mxu0 0.0
    %88 = vmatpush1.msra.mxu0 0.0
    %89 = vmatprep.subr.mxu0 0.0
    %90 = vmatpush1.msra.mxu0 0.0
    %91 = vmatprep.subr.mxu0 0.0
    %92 = vmatpush1.msra.mxu0 0.0
    %93 = vmatprep.subr.mxu0 0.0
    %94 = vmatpush1.msra.mxu0 0.0
    %95 = vmatprep.subr.mxu0 0.0
    %96 = vmatpush1.msra.mxu0 0.0
    %97 = vmatprep.subr.mxu0 0.0
    %98 = vmatpush1.msra.mxu0 0.0
    %99 = vmatprep.subr.mxu0 0.0
    %100 = vmatpush1.msra.mxu0 0.0
    %101 = vmatprep.subr.mxu0 0.0
    %102 = vmatpush1.msra.mxu0 0.0
    %103 = vmatprep.subr.mxu0 0.0
    %104 = vmatpush1.msra.mxu0 0.0
    %105 = vmatprep.subr.mxu0 0.0
    %106 = vmatpush1.msra.mxu0 0.0
    %107 = vmatprep.subr.mxu0 0.0
    %108 = vmatpush1.msra.mxu0 0.0
    %109 = vmatprep.subr.mxu0 0.0
    %110 = vmatpush1.msra.mxu0 0.0
    %111 = vmatprep.subr.mxu0 0.0
    %112 = vmatpush1.msra.mxu0 0.0
    %113 = vmatprep.subr.mxu0 0.0
    %114 = vmatpush1.msra.mxu0 0.0
    %115 = vmatprep.subr.mxu0 0.0
    %116 = vmatpush1.msra.mxu0 0.0
    %117 = vmatprep.subr.mxu0 0.0
    %118 = vmatpush1.msra.mxu0 0.0
    %119 = vmatprep.mubr.f32.mxu0 0.0
    %120 = vmatmul.mubr.f32.gmra.mrb[0].mxu0 %v50
    %v121 = vpop.f32.mrb[0].mxu0
    %v122 = vadd.f32 %v46, %v121
    %v123 = vpop.f32.mrb[0].mxu0
    %124 = vmatprep.mubr.f32.mxu0 0.0
    %125 = vmatmul.mubr.f32.gmra.mrb[0].mxu0 %v53
    %v126 = vpop.f32.mrb[0].mxu0
    %v127 = vadd.f32 %v46, %v126
    %v128 = vpop.f32.mrb[0].mxu0
    %129 = vdwg.mxu0
    %v130 = vld [vmem:[%s3] sm:$0x1]
    %v131 = vld [vmem:[%s4] sm:$0x1]
    %v132 = vadd.f32 %v35, %v122
    %v133 = vadd.f32 %v36, %v127
    %v134 = vsel %vm48, %v132, 0.0
    %135 = vadd.xlane.f32.xlu0 %v134
    %v136 = vpop.xlane.xlu0 %135
    %v137 = vsel %vm48, %v133, 0.0
    %138 = vadd.xlane.f32.xlu0 %v137
    %v139 = vpop.xlane.xlu0 %138
    %v140 = vrcp.pop 32.0
    %v141 = vmul.f32 %v136, %v140
    %v142 = vmul.f32 %v139, %v140
    %v143 = vsub.f32 %v132, %v141
    %v144 = vsub.f32 %v133, %v142
    %v145 = vmul.f32 %v143, %v143
    %v146 = vmul.f32 %v144, %v144
    %v147 = vsel %vm48, %v145, 0.0
    %148 = vadd.xlane.f32.xlu0 %v147
    %v149 = vpop.xlane.xlu0 %148
    %v150 = vsel %vm48, %v146, 0.0
    %151 = vadd.xlane.f32.xlu0 %v150
    %v152 = vpop.xlane.xlu0 %151
    %v153 = vmul.f32 %v149, %v140
    %v154 = vmul.f32 %v152, %v140
    %v155 = vadd.f32 %v153, 1e-09
    %v156 = vadd.f32 %v154, 1e-09
    %v157 = vrsqrt.pop %v155
    %v158 = vrsqrt.pop %v156
    %v159 = vmul.f32 %v143, %v157
    %v160 = vmul.f32 %v144, %v158
    %v162 = vlaneseq
    %v163 = vshrl.u32 %v162, 7
    %v164 = vsub.s32 0, %v163
    %v165 = vrot.slane %v130, %v164
    %v167 = vmul.f32 %v159, %v165
    %v168 = vmul.f32 %v160, %v165
    %v170 = vlaneseq
    %v171 = vshrl.u32 %v170, 7
    %v172 = vsub.s32 0, %v171
    %v173 = vrot.slane %v131, %v172
    %v175 = vadd.f32 %v167, %v173
    %v176 = vadd.f32 %v168, %v173
    %177 = vst.msk [vmem:[#allocation5] sm:$0xff] %vm48, %v175
    %178 = vst.msk [vmem:[#allocation5 + $0x8] sm:$0xff] %vm48, %v176
    // Predicated region
    $region26: #{tpu_custom_call.1} parent=1 // pred_check
      _
    $region27: #{tpu_custom_call.1} parent=1 // pred_check_branch
      %180 = sbr.rel (0) target = $region29
    $region28: #{tpu_custom_call.1} parent=1 // pred_region
      %s182 = ssub.s32 256, 256
      %183 = vsyncadd [#allocation4], %s182
      %s184 = sshll.u32 [#allocation5], 4
      %s185 = int_to_ptr.vmem [resolvable:$true] %s184
      %190 = dma.vmem_to_hbm [thread:$0]  %s185, 256, %s5, [#allocation4], 128, 128, 8
    $region29: #{tpu_custom_call.1} parent=1 // pred_fallthru
      _
    // Predicated region
    $region30: #{tpu_custom_call.1} parent=1 // pred_check
      _
    $region31: #{tpu_custom_call.1} parent=1 // pred_check_branch
      %192 = sbr.rel (0) target = $region33
    $region32: #{tpu_custom_call.1} parent=1 // pred_region
      %193 = dma.done [#allocation4], 256
    $region33: #{tpu_custom_call.1} parent=1 // pred_fallthru
      _
    %194 = vsyncpa [#allocation3], 1
    %195 = vsyncpa [#allocation4], 1

</llo_original>
